<compile_context>
chip_gen: v7x
topology: tpu7x:2x2x1
jax: 0.10.0
libtpu: 0.0.40
codegen_flags: <defaults>
</compile_context>

<pallas_src>
from functools import partial

import numpy as np
import jax
import jax.numpy as jnp
from jax.experimental import pallas as pl
from jax.experimental.pallas import tpu as pltpu


def _round_up(x, m):
    return (x + m - 1) // m * m


# ---------------------------------------------------------------------------
# Pallas kernel: fused 3-layer MLP on one (TILE_B, 32) batch tile.
# Weights / biases are full-array resident blocks; activations use the MXU
# (bf16 operands, f32 accumulation), bias + ReLU on the VPU in f32.
# ---------------------------------------------------------------------------
def _mlp_kernel(x_ref, w1_ref, b1_ref, w2_ref, b2_ref, w3_ref, b3_ref, o_ref):
    x = x_ref[...]                                                     # (TB, 32)

    h1 = jnp.dot(x, w1_ref[...], preferred_element_type=jnp.float32)  # (TB, 64)
    h1 = jnp.maximum(h1 + b1_ref[...], 0.0)                           # bias+ReLU f32

    h2 = jnp.dot(h1.astype(w2_ref.dtype), w2_ref[...],
                 preferred_element_type=jnp.float32)                  # (TB, 64)
    h2 = jnp.maximum(h2 + b2_ref[...], 0.0)

    o = jnp.dot(h2.astype(w3_ref.dtype), w3_ref[...],
                preferred_element_type=jnp.float32) + b3_ref[...]     # (TB, 128)
    o_ref[...] = o.astype(o_ref.dtype)


# ---------------------------------------------------------------------------
# Parameter preparation: zero-pad to TPU-friendly shapes, cast matmul weights.
#   w1: (26,64) -> (32,64)   (padded rows are zero, contribute nothing)
#   w3: (64,5)  -> (64,128)  (lane-dense output; extra columns are zero)
#   b3: (1,5)   -> (1,128)
# Biases stay f32 (elementwise path); weights optionally bf16 (MXU-native).
# ---------------------------------------------------------------------------
def prepare_params(params, use_bf16=True):
    w1, b1, w2, b2, w3, b3 = params
    in_dim, h1 = w1.shape
    h2 = w2.shape[1]
    out_dim = w3.shape[1]
    in_pad = _round_up(in_dim, 8)       # 26 -> 32
    out_pad = _round_up(out_dim, 128)   # 5  -> 128
    mm_dtype = jnp.bfloat16 if use_bf16 else jnp.float32

    w1p = jnp.pad(w1.astype(jnp.float32),
                  ((0, in_pad - in_dim), (0, 0))).astype(mm_dtype)
    w2p = w2.astype(mm_dtype)
    w3p = jnp.pad(w3.astype(jnp.float32),
                  ((0, 0), (0, out_pad - out_dim))).astype(mm_dtype)
    b3p = jnp.pad(b3.astype(jnp.float32), ((0, 0), (0, out_pad - out_dim)))

    kernel_params = (w1p, b1.astype(jnp.float32), w2p, b2.astype(jnp.float32), w3p, b3p)
    return kernel_params, (in_dim, in_pad, out_dim, out_pad)


# ---------------------------------------------------------------------------
# Batched Pallas forward: grid over batch tiles, weights resident in VMEM.
# ---------------------------------------------------------------------------
@partial(jax.jit, static_argnames=("tile_b", "use_bf16"))
def _pallas_forward(x, params, *, tile_b, use_bf16):
    (w1, b1, w2, b2, w3, b3), (in_dim, in_pad, out_dim, out_pad) = prepare_params(
        params, use_bf16)
    h1 = w1.shape[1]
    h2 = w2.shape[1]

    B = x.shape[0]
    tb = min(tile_b, _round_up(B, 8))          # tile rows, multiple of 8
    b_pad = _round_up(B, tb)                   # tb divides b_pad by construction

    # Cast to the matmul dtype first (halves DMA bytes when bf16), then pad
    # batch rows and the feature dim (26 -> 32) with zeros.
    xp = jnp.pad(x.astype(w1.dtype), ((0, b_pad - B), (0, in_pad - in_dim)))

    grid = (b_pad // tb,)
    out = pl.pallas_call(
        _mlp_kernel,
        out_shape=jax.ShapeDtypeStruct((b_pad, out_pad), jnp.float32),
        grid=grid,
        in_specs=[
            pl.BlockSpec((tb, in_pad), lambda i: (i, 0)),     # x: tiled over batch
            pl.BlockSpec((in_pad, h1), lambda i: (0, 0)),     # weights/biases resident
            pl.BlockSpec((1, h1), lambda i: (0, 0)),
            pl.BlockSpec((h1, h2), lambda i: (0, 0)),
            pl.BlockSpec((1, h2), lambda i: (0, 0)),
            pl.BlockSpec((h2, out_pad), lambda i: (0, 0)),
            pl.BlockSpec((1, out_pad), lambda i: (0, 0)),
        ],
        out_specs=pl.BlockSpec((tb, out_pad), lambda i: (i, 0)),
        compiler_params=pltpu.CompilerParams(
            dimension_semantics=("parallel",)),               # megacore-shardable
    )(xp, w1, b1, w2, b2, w3, b3)

    return out[:B, :out_dim]


# ---------------------------------------------------------------------------
# Public wrapper. Accepts (26,) or (B, 26). Tiny batches use plain XLA (the
# pallas launch/DMA overhead dwarfs ~10K FLOPs at B==1); real batches go
# through the Pallas kernel.
# ---------------------------------------------------------------------------
def vnetwork_avalon_forward(state, params, *, tile_b=512, use_bf16=True,
                            min_pallas_batch=8):
    squeeze = state.ndim == 1
    x = state[None, :] if squeeze else state
    x = x.astype(jnp.float32)
    B = x.shape[0]

    if B < min_pallas_batch:
        # Exact f32 reference path (matches PyTorch semantics bit-for-intent).
        w1, b1, w2, b2, w3, b3 = params
        h1 = jnp.maximum(x @ w1 + b1, 0.0)
        h2 = jnp.maximum(h1 @ w2 + b2, 0.0)
        out = h2 @ w3 + b3
    else:
        out = _pallas_forward(x, params, tile_b=tile_b, use_bf16=use_bf16)

    return out[0] if squeeze else out


# ---------------------------------------------------------------------------
# Parameter init (deterministic, mirrors nn.Linear shapes):
#   fc1.weight (64, 26), fc1.bias (64,)  -> stored transposed as (26, 64)
#   fc2.weight (64, 64), fc2.bias (64,)  -> (64, 64)
#   fc3.weight (5, 64),  fc3.bias (5,)   -> (64, 5)
# Biases stored as (1, out) for broadcasting inside the kernel.
# ---------------------------------------------------------------------------
def init_params(key, input_dims=26, fc1_dims=64, fc2_dims=64, num_player=5):
    ks = jax.random.split(key, 6)

    def linear(kw, kb, fan_in, fan_out):
        bound = 1.0 / np.sqrt(fan_in)
        w = jax.random.uniform(kw, (fan_in, fan_out), jnp.float32, -bound, bound)
        b = jax.random.uniform(kb, (1, fan_out), jnp.float32, -bound, bound)
        return w, b

    w1, b1 = linear(ks[0], ks[1], input_dims, fc1_dims)
    w2, b2 = linear(ks[2], ks[3], fc1_dims, fc2_dims)
    w3, b3 = linear(ks[4], ks[5], fc2_dims, num_player)
    return (w1, b1, w2, b2, w3, b3)


# ---------------------------------------------------------------------------
# Host-side glue: build the 26-dim state vector exactly as the PyTorch forward
# does (scalars + padded lists). This is Python-level preprocessing, not kernel
# work.
# ---------------------------------------------------------------------------
def build_state(quest_leader, phase, turn, round_, done, good_victory,
                team_votes, quest_team, quest_votes, quest_results,
                num_player=5):
    team_votes = list(team_votes)
    if team_votes == []:
        team_votes = [0 for _ in range(num_player)]
    quest_team = list(quest_team)
    while len(quest_team) < 5:
        quest_team.append(-2)
    quest_votes = list(quest_votes)
    while len(quest_votes) < 5:
        quest_votes.append(-2)
    quest_results_num = [1 if q is True else 0 for q in quest_results]
    while len(quest_results_num) < 5:
        quest_results_num.append(-2)
    state = np.array(
        [quest_leader, phase, turn, round_, done, good_victory]
        + team_votes + quest_team + quest_votes + quest_results_num,
        dtype=np.float32,
    )
    return jnp.asarray(state)  # (26,)


if __name__ == "__main__":
    key = jax.random.PRNGKey(0)
    params = init_params(key)

    # Deterministic synthetic observation (Avalon mid-game snapshot).
    state = build_state(
        quest_leader=2, phase=1, turn=3, round_=0, done=0, good_victory=0,
        team_votes=[1, 0, 1, 1, 0],
        quest_team=[0, 2, 4],
        quest_votes=[1, 1, 0],
        quest_results=[True, False],
    )
    assert state.shape == (26,)

    # Single-observation path (exact PyTorch semantics, plain XLA at B=1).
    out_single = vnetwork_avalon_forward(state, params)
    out_single = jax.block_until_ready(out_single)
    assert out_single.shape == (5,)

    # Batched path through the Pallas kernel: 128 parallel game states.
    B = 128
    kbatch = jax.random.split(key, 2)[1]
    batch = jax.random.uniform(kbatch, (B, 26), jnp.float32, -2.0, 2.0)
    batch = batch.at[0].set(state)   # row 0 reproduces the deterministic state

    out_batch = vnetwork_avalon_forward(batch, params)   # Pallas kernel (bf16 MXU)
    out_batch = jax.block_until_ready(out_batch)
    assert out_batch.shape == (B, 5)
    assert out_batch.dtype == jnp.float32
    assert bool(jnp.all(jnp.isfinite(out_batch)))

    # Sanity: Pallas (bf16 matmul, f32 accum) vs exact f32 XLA reference.
    ref_w1, ref_b1, ref_w2, ref_b2, ref_w3, ref_b3 = params
    ref_h1 = jnp.maximum(batch @ ref_w1 + ref_b1, 0.0)
    ref_h2 = jnp.maximum(ref_h1 @ ref_w2 + ref_b2, 0.0)
    ref_out = ref_h2 @ ref_w3 + ref_b3
    np.testing.assert_allclose(np.asarray(out_batch), np.asarray(ref_out),
                               rtol=1e-1, atol=1e-1)
    np.testing.assert_allclose(np.asarray(out_batch[0]), np.asarray(out_single),
                               rtol=1e-1, atol=1e-1)

    print("KERNEL_OK")
</pallas_src>

<mosaic_0001>
module attributes {stable_mosaic.version = 11 : i64} {
  func.func @_mlp_kernel(%arg0: i32, %arg1: memref<128x32xbf16, #tpu.memory_space<vmem>>, %arg2: memref<32x64xbf16, #tpu.memory_space<vmem>>, %arg3: memref<1x64xf32, #tpu.memory_space<vmem>>, %arg4: memref<64x64xbf16, #tpu.memory_space<vmem>>, %arg5: memref<1x64xf32, #tpu.memory_space<vmem>>, %arg6: memref<64x128xbf16, #tpu.memory_space<vmem>>, %arg7: memref<1x128xf32, #tpu.memory_space<vmem>>, %arg8: memref<128x128xf32, #tpu.memory_space<vmem>>) attributes {dimension_semantics = [#tpu.dimension_semantics<parallel>], iteration_bounds = array<i64: 1>, scalar_prefetch = 0 : i64, scratch_operands = 0 : i64, tpu.core_type = #tpu.core_type<tc>, window_params = [{transform_indices = @transform_0, window_bounds = array<i64: 128, 32>}, {pipeline_mode = #tpu.pipeline_mode<synchronous>, transform_indices = @transform_1, window_bounds = array<i64: 32, 64>}, {pipeline_mode = #tpu.pipeline_mode<synchronous>, transform_indices = @transform_2, window_bounds = array<i64: 1, 64>}, {pipeline_mode = #tpu.pipeline_mode<synchronous>, transform_indices = @transform_3, window_bounds = array<i64: 64, 64>}, {pipeline_mode = #tpu.pipeline_mode<synchronous>, transform_indices = @transform_4, window_bounds = array<i64: 1, 64>}, {pipeline_mode = #tpu.pipeline_mode<synchronous>, transform_indices = @transform_5, window_bounds = array<i64: 64, 128>}, {pipeline_mode = #tpu.pipeline_mode<synchronous>, transform_indices = @transform_6, window_bounds = array<i64: 1, 128>}, {transform_indices = @transform_7, window_bounds = array<i64: 128, 128>}]} {
    %c0 = arith.constant 0 : index
    %c0_0 = arith.constant 0 : index
    %0 = vector.load %arg1[%c0, %c0_0] : memref<128x32xbf16, #tpu.memory_space<vmem>>, vector<128x32xbf16>
    %c0_1 = arith.constant 0 : index
    %c0_2 = arith.constant 0 : index
    %1 = vector.load %arg2[%c0_1, %c0_2] : memref<32x64xbf16, #tpu.memory_space<vmem>>, vector<32x64xbf16>
    %cst = arith.constant dense<0.000000e+00> : vector<128x64xf32>
    %2 = tpu.matmul %0, %1, %cst {dimension_numbers = #tpu.dot_dimension_numbers<[1], [0], [0], [1], [0, 0, 1, 1], [], []>} : vector<128x32xbf16>, vector<32x64xbf16>, vector<128x64xf32> -> vector<128x64xf32>
    %c0_3 = arith.constant 0 : index
    %c0_4 = arith.constant 0 : index
    %3 = vector.load %arg3[%c0_3, %c0_4] : memref<1x64xf32, #tpu.memory_space<vmem>>, vector<1x64xf32>
    %4 = vector.broadcast %3 : vector<1x64xf32> to vector<128x64xf32>
    %5 = arith.addf %2, %4 : vector<128x64xf32>
    %cst_5 = arith.constant 0.000000e+00 : f32
    %6 = vector.broadcast %cst_5 : f32 to vector<128x64xf32>
    %7 = arith.maximumf %5, %6 : vector<128x64xf32>
    %8 = arith.truncf %7 : vector<128x64xf32> to vector<128x64xbf16>
    %c0_6 = arith.constant 0 : index
    %c0_7 = arith.constant 0 : index
    %9 = vector.load %arg4[%c0_6, %c0_7] : memref<64x64xbf16, #tpu.memory_space<vmem>>, vector<64x64xbf16>
    %cst_8 = arith.constant dense<0.000000e+00> : vector<128x64xf32>
    %10 = tpu.matmul %8, %9, %cst_8 {dimension_numbers = #tpu.dot_dimension_numbers<[1], [0], [0], [1], [0, 0, 1, 1], [], []>} : vector<128x64xbf16>, vector<64x64xbf16>, vector<128x64xf32> -> vector<128x64xf32>
    %c0_9 = arith.constant 0 : index
    %c0_10 = arith.constant 0 : index
    %11 = vector.load %arg5[%c0_9, %c0_10] : memref<1x64xf32, #tpu.memory_space<vmem>>, vector<1x64xf32>
    %12 = vector.broadcast %11 : vector<1x64xf32> to vector<128x64xf32>
    %13 = arith.addf %10, %12 : vector<128x64xf32>
    %cst_11 = arith.constant 0.000000e+00 : f32
    %14 = vector.broadcast %cst_11 : f32 to vector<128x64xf32>
    %15 = arith.maximumf %13, %14 : vector<128x64xf32>
    %16 = arith.truncf %15 : vector<128x64xf32> to vector<128x64xbf16>
    %c0_12 = arith.constant 0 : index
    %c0_13 = arith.constant 0 : index
    %17 = vector.load %arg6[%c0_12, %c0_13] : memref<64x128xbf16, #tpu.memory_space<vmem>>, vector<64x128xbf16>
    %cst_14 = arith.constant dense<0.000000e+00> : vector<128x128xf32>
    %18 = tpu.matmul %16, %17, %cst_14 {dimension_numbers = #tpu.dot_dimension_numbers<[1], [0], [0], [1], [0, 0, 1, 1], [], []>} : vector<128x64xbf16>, vector<64x128xbf16>, vector<128x128xf32> -> vector<128x128xf32>
    %c0_15 = arith.constant 0 : index
    %c0_16 = arith.constant 0 : index
    %19 = vector.load %arg7[%c0_15, %c0_16] : memref<1x128xf32, #tpu.memory_space<vmem>>, vector<1x128xf32>
    %20 = vector.broadcast %19 : vector<1x128xf32> to vector<128x128xf32>
    %21 = arith.addf %18, %20 : vector<128x128xf32>
    %c0_17 = arith.constant 0 : index
    %c0_18 = arith.constant 0 : index
    %22 = vector.load %arg8[%c0_17, %c0_18] : memref<128x128xf32, #tpu.memory_space<vmem>>, vector<128x128xf32>
    tpu.vector_store %arg8[%c0_17, %c0_18], %21 {strides = array<i32>} : memref<128x128xf32, #tpu.memory_space<vmem>>, vector<128x128xf32>,
    return
  }
  func.func @transform_0(%arg0: i32) -> (i32, i32) {
    %c0_i32 = arith.constant 0 : i32
    %c0_i32_0 = arith.constant 0 : i32
    return %arg0, %c0_i32 : i32, i32
  }
  func.func @transform_1(%arg0: i32) -> (i32, i32) {
    %c0_i32 = arith.constant 0 : i32
    %c0_i32_0 = arith.constant 0 : i32
    %c0_i32_1 = arith.constant 0 : i32
    return %c0_i32, %c0_i32_0 : i32, i32
  }
  func.func @transform_2(%arg0: i32) -> (i32, i32) {
    %c0_i32 = arith.constant 0 : i32
    %c0_i32_0 = arith.constant 0 : i32
    %c0_i32_1 = arith.constant 0 : i32
    return %c0_i32, %c0_i32_0 : i32, i32
  }
  func.func @transform_3(%arg0: i32) -> (i32, i32) {
    %c0_i32 = arith.constant 0 : i32
    %c0_i32_0 = arith.constant 0 : i32
    %c0_i32_1 = arith.constant 0 : i32
    return %c0_i32, %c0_i32_0 : i32, i32
  }
  func.func @transform_4(%arg0: i32) -> (i32, i32) {
    %c0_i32 = arith.constant 0 : i32
    %c0_i32_0 = arith.constant 0 : i32
    %c0_i32_1 = arith.constant 0 : i32
    return %c0_i32, %c0_i32_0 : i32, i32
  }
  func.func @transform_5(%arg0: i32) -> (i32, i32) {
    %c0_i32 = arith.constant 0 : i32
    %c0_i32_0 = arith.constant 0 : i32
    %c0_i32_1 = arith.constant 0 : i32
    return %c0_i32, %c0_i32_0 : i32, i32
  }
  func.func @transform_6(%arg0: i32) -> (i32, i32) {
    %c0_i32 = arith.constant 0 : i32
    %c0_i32_0 = arith.constant 0 : i32
    %c0_i32_1 = arith.constant 0 : i32
    return %c0_i32, %c0_i32_0 : i32, i32
  }
  func.func @transform_7(%arg0: i32) -> (i32, i32) {
    %c0_i32 = arith.constant 0 : i32
    %c0_i32_0 = arith.constant 0 : i32
    return %arg0, %c0_i32 : i32, i32
  }
}

</mosaic_0001>

<llo_original>
// kernel: _pallas_forward.1
$region0: #{_pallas_forward.1}
  #allocation0 [shape = 'u32[]', space=smem, size = 0x4, offset = 0x4, fixed_abs, tag = 'smem constant byte address 0x4 - core index']
  #allocation1 [shape = 'u32[144,128]{1,0:T(1,128)}', space=vmem, size = 0x12000, scoped, tag = 'internal scratch']
  %s0 = inlined_call_operand.vmem [shape: bf16[128,32], index: 0, kind: input, shape index: {}]
  %s1 = inlined_call_operand.vmem [shape: bf16[32,64], index: 1, kind: input, shape index: {}]
  %s2 = inlined_call_operand.vmem [shape: f32[1,64], index: 2, kind: input, shape index: {}]
  %s3 = inlined_call_operand.vmem [shape: bf16[64,64], index: 3, kind: input, shape index: {}]
  %s4 = inlined_call_operand.vmem [shape: f32[1,64], index: 4, kind: input, shape index: {}]
  %s5 = inlined_call_operand.vmem [shape: bf16[64,128], index: 5, kind: input, shape index: {}]
  %s6 = inlined_call_operand.vmem [shape: f32[1,128], index: 6, kind: input, shape index: {}]
  %s7 = inlined_call_operand.vmem [shape: f32[128,128], index: 7, kind: output, shape index: {}]
  %s8 = sld [smem:[#allocation0]]
  $region38: #{_pallas_forward.1} parent=0
    _
  %s10 = ssub.s32 1, %s8
  %s11 = scalar_select 0, %s10, %s8
  // Predicated region
  $region2: #{_pallas_forward.1} parent=0 // pred_check
    _
  $region3: #{_pallas_forward.1} parent=0 // pred_check_branch
    %13 = sbr.rel (0) target = $region5
  $region4: #{_pallas_forward.1} parent=0 // pred_region
    _
  $region5: #{_pallas_forward.1} parent=0 // pred_fallthru
    _
  // Predicated region
  $region6: #{_pallas_forward.1} parent=0 // pred_check
    _
  $region7: #{_pallas_forward.1} parent=0 // pred_check_branch
    %15 = sbr.rel (0) target = $region9
  $region8: #{_pallas_forward.1} parent=0 // pred_region
    _
  $region9: #{_pallas_forward.1} parent=0 // pred_fallthru
    _
  // Predicated region
  $region10: #{_pallas_forward.1} parent=0 // pred_check
    _
  $region11: #{_pallas_forward.1} parent=0 // pred_check_branch
    %17 = sbr.rel (0) target = $region13
  $region12: #{_pallas_forward.1} parent=0 // pred_region
    _
  $region13: #{_pallas_forward.1} parent=0 // pred_fallthru
    _
  // Predicated region
  $region14: #{_pallas_forward.1} parent=0 // pred_check
    _
  $region15: #{_pallas_forward.1} parent=0 // pred_check_branch
    %19 = sbr.rel (0) target = $region17
  $region16: #{_pallas_forward.1} parent=0 // pred_region
    _
  $region17: #{_pallas_forward.1} parent=0 // pred_fallthru
    _
  // Predicated region
  $region18: #{_pallas_forward.1} parent=0 // pred_check
    _
  $region19: #{_pallas_forward.1} parent=0 // pred_check_branch
    %21 = sbr.rel (0) target = $region21
  $region20: #{_pallas_forward.1} parent=0 // pred_region
    _
  $region21: #{_pallas_forward.1} parent=0 // pred_fallthru
    _
  // Predicated region
  $region22: #{_pallas_forward.1} parent=0 // pred_check
    _
  $region23: #{_pallas_forward.1} parent=0 // pred_check_branch
    %23 = sbr.rel (0) target = $region25
  $region24: #{_pallas_forward.1} parent=0 // pred_region
    _
  $region25: #{_pallas_forward.1} parent=0 // pred_fallthru
    _
  // Predicated region
  $region26: #{_pallas_forward.1} parent=0 // pred_check
    _
  $region27: #{_pallas_forward.1} parent=0 // pred_check_branch
    %25 = sbr.rel (0) target = $region29
  $region28: #{_pallas_forward.1} parent=0 // pred_region
    _
  $region29: #{_pallas_forward.1} parent=0 // pred_fallthru
    _
  %v27 = vld [vmem:[%s0] sm:$0xf]
  %v28 = vld [vmem:[%s0 + $0x4] sm:$0xf]
  %v29 = vld [vmem:[%s0 + $0x8] sm:$0xf]
  %v30 = vld [vmem:[%s0 + $0xc] sm:$0xf]
  %v31 = vld [vmem:[%s0 + $0x10] sm:$0xf]
  %v32 = vld [vmem:[%s0 + $0x14] sm:$0xf]
  %v33 = vld [vmem:[%s0 + $0x18] sm:$0xf]
  %v34 = vld [vmem:[%s0 + $0x1c] sm:$0xf]
  %v35 = vld [vmem:[%s0 + $0x20] sm:$0xf]
  %v36 = vld [vmem:[%s0 + $0x24] sm:$0xf]
  %v37 = vld [vmem:[%s0 + $0x28] sm:$0xf]
  %v38 = vld [vmem:[%s0 + $0x2c] sm:$0xf]
  %v39 = vld [vmem:[%s0 + $0x30] sm:$0xf]
  %v40 = vld [vmem:[%s0 + $0x34] sm:$0xf]
  %v41 = vld [vmem:[%s0 + $0x38] sm:$0xf]
  %v42 = vld [vmem:[%s0 + $0x3c] sm:$0xf]
  %v43 = vld [vmem:[%s1] sm:$0xf]
  %v44 = vld [vmem:[%s1 + $0x4] sm:$0xf]
  %v45 = vld [vmem:[%s1 + $0x8] sm:$0xf]
  %v46 = vld [vmem:[%s1 + $0xc] sm:$0xf]
  %v47 = vld [vmem:[%s2] sm:$0x1]
  %v49 = vlaneseq
  %v50 = vshrl.u32 %v49, 7
  %v51 = vsub.s32 0, %v50
  %v52 = vrot.slane %v47, %v51
  %v70 = vunpack.c.l.b16 %v27
  %v71 = vunpack.c.l.b16 %v28
  %v72 = vunpack.c.l.b16 %v29
  %v73 = vunpack.c.l.b16 %v30
  %v74 = vunpack.c.l.b16 %v31
  %v75 = vunpack.c.l.b16 %v32
  %v76 = vunpack.c.l.b16 %v33
  %v77 = vunpack.c.l.b16 %v34
  %v78 = vunpack.c.l.b16 %v35
  %v79 = vunpack.c.l.b16 %v36
  %v80 = vunpack.c.l.b16 %v37
  %v81 = vunpack.c.l.b16 %v38
  %v82 = vunpack.c.l.b16 %v39
  %v83 = vunpack.c.l.b16 %v40
  %v84 = vunpack.c.l.b16 %v41
  %v85 = vunpack.c.l.b16 %v42
  %v86 = vpack.c.b16 %v71, %v70
  %v87 = vpack.c.b16 %v73, %v72
  %v88 = vpack.c.b16 %v75, %v74
  %v89 = vpack.c.b16 %v77, %v76
  %v90 = vpack.c.b16 %v79, %v78
  %v91 = vpack.c.b16 %v81, %v80
  %v92 = vpack.c.b16 %v83, %v82
  %v93 = vpack.c.b16 %v85, %v84
  %v98 = vunpack.c.l.b16 %v43
  %v99 = vunpack.c.l.b16 %v44
  %v100 = vunpack.c.l.b16 %v45
  %v101 = vunpack.c.l.b16 %v46
  %v102 = vpack.c.b16 %v99, %v98
  %v103 = vpack.c.b16 %v101, %v100
  %vm106 = vcmask 261120
  %v108 = vsel %vm106, %v86, 0
  %v111 = vsel %vm106, %v87, 0
  %v114 = vsel %vm106, %v88, 0
  %v117 = vsel %vm106, %v89, 0
  %v120 = vsel %vm106, %v90, 0
  %v123 = vsel %vm106, %v91, 0
  %v126 = vsel %vm106, %v92, 0
  %v129 = vsel %vm106, %v93, 0
  %131 = vmatprep.subr.bf16.mxu0 0
  %132 = vmatpush1.bf16.msra.mxu0 %v102
  %133 = vmatprep.subr.bf16.mxu0 0
  %134 = vmatpush1.bf16.msra.mxu0 %v103
  %135 = vmatprep.subr.bf16.mxu0 0
  %136 = vmatpush1.bf16.msra.mxu0 0
  %137 = vmatprep.subr.bf16.mxu0 0
  %138 = vmatpush1.bf16.msra.mxu0 0
  %139 = vmatprep.subr.bf16.mxu0 0
  %140 = vmatpush1.bf16.msra.mxu0 0
  %141 = vmatprep.subr.bf16.mxu0 0
  %142 = vmatpush1.bf16.msra.mxu0 0
  %143 = vmatprep.subr.bf16.mxu0 0
  %144 = vmatpush1.bf16.msra.mxu0 0
  %145 = vmatprep.subr.bf16.mxu0 0
  %146 = vmatpush1.bf16.msra.mxu0 0
  %147 = vmatprep.subr.bf16.mxu0 0
  %148 = vmatpush1.bf16.msra.mxu0 0
  %149 = vmatprep.subr.bf16.mxu0 0
  %150 = vmatpush1.bf16.msra.mxu0 0
  %151 = vmatprep.subr.bf16.mxu0 0
  %152 = vmatpush1.bf16.msra.mxu0 0
  %153 = vmatprep.subr.bf16.mxu0 0
  %154 = vmatpush1.bf16.msra.mxu0 0
  %155 = vmatprep.subr.bf16.mxu0 0
  %156 = vmatpush1.bf16.msra.mxu0 0
  %157 = vmatprep.subr.bf16.mxu0 0
  %158 = vmatpush1.bf16.msra.mxu0 0
  %159 = vmatprep.subr.bf16.mxu0 0
  %160 = vmatpush1.bf16.msra.mxu0 0
  %161 = vmatprep.subr.bf16.mxu0 0
  %162 = vmatpush1.bf16.msra.mxu0 0
  %163 = vmatprep.mubr.bf16.mxu0 0
  %164 = vmatmul.mubr.bf16.gmra.mrb[0].mxu0 %v108
  %v165 = vpop.f32.mrb[0].mxu0
  %v166 = vadd.f32 %v52, %v165
  %v167 = vpop.f32.mrb[0].mxu0
  %v168 = vpop.f32.mrb[0].mxu0
  %v169 = vadd.f32 %v52, %v168
  %v170 = vpop.f32.mrb[0].mxu0
  %171 = vmatprep.mubr.bf16.mxu0 0
  %172 = vmatmul.mubr.bf16.gmra.mrb[0].mxu0 %v111
  %v173 = vpop.f32.mrb[0].mxu0
  %v174 = vadd.f32 %v52, %v173
  %v175 = vpop.f32.mrb[0].mxu0
  %v176 = vpop.f32.mrb[0].mxu0
  %v177 = vadd.f32 %v52, %v176
  %v178 = vpop.f32.mrb[0].mxu0
  %179 = vmatprep.mubr.bf16.mxu0 0
  %180 = vmatmul.mubr.bf16.gmra.mrb[0].mxu0 %v114
  %v181 = vpop.f32.mrb[0].mxu0
  %v182 = vadd.f32 %v52, %v181
  %v183 = vpop.f32.mrb[0].mxu0
  %v184 = vpop.f32.mrb[0].mxu0
  %v185 = vadd.f32 %v52, %v184
  %v186 = vpop.f32.mrb[0].mxu0
  %187 = vmatprep.mubr.bf16.mxu0 0
  %188 = vmatmul.mubr.bf16.gmra.mrb[0].mxu0 %v117
  %v189 = vpop.f32.mrb[0].mxu0
  %v190 = vadd.f32 %v52, %v189
  %v191 = vpop.f32.mrb[0].mxu0
  %v192 = vpop.f32.mrb[0].mxu0
  %v193 = vadd.f32 %v52, %v192
  %v194 = vpop.f32.mrb[0].mxu0
  %195 = vmatprep.mubr.bf16.mxu0 0
  %196 = vmatmul.mubr.bf16.gmra.mrb[0].mxu0 %v120
  %v197 = vpop.f32.mrb[0].mxu0
  %v198 = vadd.f32 %v52, %v197
  %v199 = vpop.f32.mrb[0].mxu0
  %v200 = vpop.f32.mrb[0].mxu0
  %v201 = vadd.f32 %v52, %v200
  %v202 = vpop.f32.mrb[0].mxu0
  %203 = vmatprep.mubr.bf16.mxu0 0
  %204 = vmatmul.mubr.bf16.gmra.mrb[0].mxu0 %v123
  %v205 = vpop.f32.mrb[0].mxu0
  %v206 = vadd.f32 %v52, %v205
  %v207 = vpop.f32.mrb[0].mxu0
  %v208 = vpop.f32.mrb[0].mxu0
  %v209 = vadd.f32 %v52, %v208
  %v210 = vpop.f32.mrb[0].mxu0
  %211 = vmatprep.mubr.bf16.mxu0 0
  %212 = vmatmul.mubr.bf16.gmra.mrb[0].mxu0 %v126
  %v213 = vpop.f32.mrb[0].mxu0
  %v214 = vadd.f32 %v52, %v213
  %v215 = vpop.f32.mrb[0].mxu0
  %v216 = vpop.f32.mrb[0].mxu0
  %v217 = vadd.f32 %v52, %v216
  %v218 = vpop.f32.mrb[0].mxu0
  %219 = vmatprep.mubr.bf16.mxu0 0
  %220 = vmatmul.mubr.bf16.gmra.mrb[0].mxu0 %v129
  %v221 = vpop.f32.mrb[0].mxu0
  %v222 = vadd.f32 %v52, %v221
  %v223 = vpop.f32.mrb[0].mxu0
  %v224 = vpop.f32.mrb[0].mxu0
  %v225 = vadd.f32 %v52, %v224
  %v226 = vpop.f32.mrb[0].mxu0
  %227 = vdwg.mxu0
  %v228 = vmax.f32 %v166, 0.0
  %v229 = vmax.f32 %v169, 0.0
  %v230 = vmax.f32 %v174, 0.0
  %v231 = vmax.f32 %v177, 0.0
  %v232 = vmax.f32 %v182, 0.0
  %v233 = vmax.f32 %v185, 0.0
  %v234 = vmax.f32 %v190, 0.0
  %v235 = vmax.f32 %v193, 0.0
  %v236 = vmax.f32 %v198, 0.0
  %v237 = vmax.f32 %v201, 0.0
  %v238 = vmax.f32 %v206, 0.0
  %v239 = vmax.f32 %v209, 0.0
  %v240 = vmax.f32 %v214, 0.0
  %v241 = vmax.f32 %v217, 0.0
  %v242 = vmax.f32 %v222, 0.0
  %v243 = vmax.f32 %v225, 0.0
  %v244 = vpack.c.bf16 %v229, %v228
  %v245 = vpack.c.bf16 %v231, %v230
  %v246 = vpack.c.bf16 %v233, %v232
  %v247 = vpack.c.bf16 %v235, %v234
  %v248 = vpack.c.bf16 %v237, %v236
  %v249 = vpack.c.bf16 %v239, %v238
  %v250 = vpack.c.bf16 %v241, %v240
  %v251 = vpack.c.bf16 %v243, %v242
  %v252 = vld [vmem:[%s3] sm:$0xf]
  %v253 = vld [vmem:[%s3 + $0x4] sm:$0xf]
  %v254 = vld [vmem:[%s3 + $0x8] sm:$0xf]
  %v255 = vld [vmem:[%s3 + $0xc] sm:$0xf]
  %v256 = vld [vmem:[%s3 + $0x10] sm:$0xf]
  %v257 = vld [vmem:[%s3 + $0x14] sm:$0xf]
  %v258 = vld [vmem:[%s3 + $0x18] sm:$0xf]
  %v259 = vld [vmem:[%s3 + $0x1c] sm:$0xf]
  %v260 = vld [vmem:[%s4] sm:$0x1]
  %v262 = vlaneseq
  %v263 = vshrl.u32 %v262, 7
  %v264 = vsub.s32 0, %v263
  %v265 = vrot.slane %v260, %v264
  %v275 = vunpack.c.l.b16 %v252
  %v276 = vunpack.c.l.b16 %v253
  %v277 = vunpack.c.l.b16 %v254
  %v278 = vunpack.c.l.b16 %v255
  %v279 = vunpack.c.l.b16 %v256
  %v280 = vunpack.c.l.b16 %v257
  %v281 = vunpack.c.l.b16 %v258
  %v282 = vunpack.c.l.b16 %v259
  %v283 = vpack.c.b16 %v276, %v275
  %v284 = vpack.c.b16 %v278, %v277
  %v285 = vpack.c.b16 %v280, %v279
  %v286 = vpack.c.b16 %v282, %v281
  %vm291 = vcmask 523264
  %v293 = vsel %vm291, %v244, 0
  %v296 = vsel %vm291, %v245, 0
  %v299 = vsel %vm291, %v246, 0
  %v302 = vsel %vm291, %v247, 0
  %v305 = vsel %vm291, %v248, 0
  %v308 = vsel %vm291, %v249, 0
  %v311 = vsel %vm291, %v250, 0
  %v314 = vsel %vm291, %v251, 0
  %316 = vmatprep.subr.bf16.mxu0 0
  %317 = vmatpush1.bf16.msra.mxu0 %v283
  %318 = vmatprep.subr.bf16.mxu0 0
  %319 = vmatpush1.bf16.msra.mxu0 %v284
  %320 = vmatprep.subr.bf16.mxu0 0
  %321 = vmatpush1.bf16.msra.mxu0 %v285
  %322 = vmatprep.subr.bf16.mxu0 0
  %323 = vmatpush1.bf16.msra.mxu0 %v286
  %324 = vmatprep.subr.bf16.mxu0 0
  %325 = vmatpush1.bf16.msra.mxu0 0
  %326 = vmatprep.subr.bf16.mxu0 0
  %327 = vmatpush1.bf16.msra.mxu0 0
  %328 = vmatprep.subr.bf16.mxu0 0
  %329 = vmatpush1.bf16.msra.mxu0 0
  %330 = vmatprep.subr.bf16.mxu0 0
  %331 = vmatpush1.bf16.msra.mxu0 0
  %332 = vmatprep.subr.bf16.mxu0 0
  %333 = vmatpush1.bf16.msra.mxu0 0
  %334 = vmatprep.subr.bf16.mxu0 0
  %335 = vmatpush1.bf16.msra.mxu0 0
  %336 = vmatprep.subr.bf16.mxu0 0
  %337 = vmatpush1.bf16.msra.mxu0 0
  %338 = vmatprep.subr.bf16.mxu0 0
  %339 = vmatpush1.bf16.msra.mxu0 0
  %340 = vmatprep.subr.bf16.mxu0 0
  %341 = vmatpush1.bf16.msra.mxu0 0
  %342 = vmatprep.subr.bf16.mxu0 0
  %343 = vmatpush1.bf16.msra.mxu0 0
  %344 = vmatprep.subr.bf16.mxu0 0
  %345 = vmatpush1.bf16.msra.mxu0 0
  %346 = vmatprep.subr.bf16.mxu0 0
  %347 = vmatpush1.bf16.msra.mxu0 0
  %348 = vmatprep.mubr.bf16.mxu0 0
  %349 = vmatmul.mubr.bf16.gmra.mrb[0].mxu0 %v293
  %v350 = vpop.f32.mrb[0].mxu0
  %v351 = vadd.f32 %v265, %v350
  %v352 = vpop.f32.mrb[0].mxu0
  %v353 = vpop.f32.mrb[0].mxu0
  %v354 = vadd.f32 %v265, %v353
  %v355 = vpop.f32.mrb[0].mxu0
  %356 = vmatprep.mubr.bf16.mxu0 0
  %357 = vmatmul.mubr.bf16.gmra.mrb[0].mxu0 %v296
  %v358 = vpop.f32.mrb[0].mxu0
  %v359 = vadd.f32 %v265, %v358
  %v360 = vpop.f32.mrb[0].mxu0
  %v361 = vpop.f32.mrb[0].mxu0
  %v362 = vadd.f32 %v265, %v361
  %v363 = vpop.f32.mrb[0].mxu0
  %364 = vmatprep.mubr.bf16.mxu0 0
  %365 = vmatmul.mubr.bf16.gmra.mrb[0].mxu0 %v299
  %v366 = vpop.f32.mrb[0].mxu0
  %v367 = vadd.f32 %v265, %v366
  %v368 = vpop.f32.mrb[0].mxu0
  %v369 = vpop.f32.mrb[0].mxu0
  %v370 = vadd.f32 %v265, %v369
  %v371 = vpop.f32.mrb[0].mxu0
  %372 = vmatprep.mubr.bf16.mxu0 0
  %373 = vmatmul.mubr.bf16.gmra.mrb[0].mxu0 %v302
  %v374 = vpop.f32.mrb[0].mxu0
  %v375 = vadd.f32 %v265, %v374
  %v376 = vpop.f32.mrb[0].mxu0
  %v377 = vpop.f32.mrb[0].mxu0
  %v378 = vadd.f32 %v265, %v377
  %v379 = vpop.f32.mrb[0].mxu0
  %380 = vmatprep.mubr.bf16.mxu0 0
  %381 = vmatmul.mubr.bf16.gmra.mrb[0].mxu0 %v305
  %v382 = vpop.f32.mrb[0].mxu0
  %v383 = vadd.f32 %v265, %v382
  %v384 = vpop.f32.mrb[0].mxu0
  %v385 = vpop.f32.mrb[0].mxu0
  %v386 = vadd.f32 %v265, %v385
  %v387 = vpop.f32.mrb[0].mxu0
  %388 = vmatprep.mubr.bf16.mxu0 0
  %389 = vmatmul.mubr.bf16.gmra.mrb[0].mxu0 %v308
  %v390 = vpop.f32.mrb[0].mxu0
  %v391 = vadd.f32 %v265, %v390
  %v392 = vpop.f32.mrb[0].mxu0
  %v393 = vpop.f32.mrb[0].mxu0
  %v394 = vadd.f32 %v265, %v393
  %v395 = vpop.f32.mrb[0].mxu0
  %396 = vmatprep.mubr.bf16.mxu0 0
  %397 = vmatmul.mubr.bf16.gmra.mrb[0].mxu0 %v311
  %v398 = vpop.f32.mrb[0].mxu0
  %v399 = vadd.f32 %v265, %v398
  %v400 = vpop.f32.mrb[0].mxu0
  %v401 = vpop.f32.mrb[0].mxu0
  %v402 = vadd.f32 %v265, %v401
  %v403 = vpop.f32.mrb[0].mxu0
  %404 = vmatprep.mubr.bf16.mxu0 0
  %405 = vmatmul.mubr.bf16.gmra.mrb[0].mxu0 %v314
  %v406 = vpop.f32.mrb[0].mxu0
  %v407 = vadd.f32 %v265, %v406
  %v408 = vpop.f32.mrb[0].mxu0
  %v409 = vpop.f32.mrb[0].mxu0
  %v410 = vadd.f32 %v265, %v409
  %v411 = vpop.f32.mrb[0].mxu0
  %412 = vdwg.mxu0
  %v413 = vmax.f32 %v351, 0.0
  %v414 = vmax.f32 %v354, 0.0
  %v415 = vmax.f32 %v359, 0.0
  %v416 = vmax.f32 %v362, 0.0
  %v417 = vmax.f32 %v367, 0.0
  %v418 = vmax.f32 %v370, 0.0
  %v419 = vmax.f32 %v375, 0.0
  %v420 = vmax.f32 %v378, 0.0
  %v421 = vmax.f32 %v383, 0.0
  %v422 = vmax.f32 %v386, 0.0
  %v423 = vmax.f32 %v391, 0.0
  %v424 = vmax.f32 %v394, 0.0
  %v425 = vmax.f32 %v399, 0.0
  %v426 = vmax.f32 %v402, 0.0
  %v427 = vmax.f32 %v407, 0.0
  %v428 = vmax.f32 %v410, 0.0
  %v429 = vpack.c.bf16 %v414, %v413
  %v430 = vpack.c.bf16 %v416, %v415
  %v431 = vpack.c.bf16 %v418, %v417
  %v432 = vpack.c.bf16 %v420, %v419
  %v433 = vpack.c.bf16 %v422, %v421
  %v434 = vpack.c.bf16 %v424, %v423
  %v435 = vpack.c.bf16 %v426, %v425
  %v436 = vpack.c.bf16 %v428, %v427
  %v437 = vld [vmem:[%s5] sm:$0xf]
  %v438 = vld [vmem:[%s5 + $0x4] sm:$0xf]
  %v439 = vld [vmem:[%s5 + $0x8] sm:$0xf]
  %v440 = vld [vmem:[%s5 + $0xc] sm:$0xf]
  %v441 = vld [vmem:[%s5 + $0x10] sm:$0xf]
  %v442 = vld [vmem:[%s5 + $0x14] sm:$0xf]
  %v443 = vld [vmem:[%s5 + $0x18] sm:$0xf]
  %v444 = vld [vmem:[%s5 + $0x1c] sm:$0xf]
  %v445 = vld [vmem:[%s6] sm:$0x1]
  %v447 = vlaneseq
  %v448 = vshrl.u32 %v447, 7
  %v449 = vsub.s32 0, %v448
  %v450 = vrot.slane %v445, %v449
  %v460 = vunpack.c.l.b16 %v437
  %v461 = vunpack.c.l.b16 %v438
  %v462 = vunpack.c.l.b16 %v439
  %v463 = vunpack.c.l.b16 %v440
  %v464 = vunpack.c.l.b16 %v441
  %v465 = vunpack.c.l.b16 %v442
  %v466 = vunpack.c.l.b16 %v443
  %v467 = vunpack.c.l.b16 %v444
  %v468 = vpack.c.b16 %v461, %v460
  %v469 = vpack.c.b16 %v463, %v462
  %v470 = vpack.c.b16 %v465, %v464
  %v471 = vpack.c.b16 %v467, %v466
  %v477 = vsel %vm291, %v429, 0
  %v480 = vsel %vm291, %v430, 0
  %v483 = vsel %vm291, %v431, 0
  %v486 = vsel %vm291, %v432, 0
  %v489 = vsel %vm291, %v433, 0
  %v492 = vsel %vm291, %v434, 0
  %v495 = vsel %vm291, %v435, 0
  %v498 = vsel %vm291, %v436, 0
  %500 = vmatprep.subr.bf16.mxu0 0
  %501 = vmatpush1.bf16.msra.mxu0 %v468
  %502 = vmatprep.subr.bf16.mxu0 0
  %503 = vmatpush1.bf16.msra.mxu0 %v469
  %504 = vmatprep.subr.bf16.mxu0 0
  %505 = vmatpush1.bf16.msra.mxu0 %v470
  %506 = vmatprep.subr.bf16.mxu0 0
  %507 = vmatpush1.bf16.msra.mxu0 %v471
  %508 = vmatprep.subr.bf16.mxu0 0
  %509 = vmatpush1.bf16.msra.mxu0 0
  %510 = vmatprep.subr.bf16.mxu0 0
  %511 = vmatpush1.bf16.msra.mxu0 0
  %512 = vmatprep.subr.bf16.mxu0 0
  %513 = vmatpush1.bf16.msra.mxu0 0
  %514 = vmatprep.subr.bf16.mxu0 0
  %515 = vmatpush1.bf16.msra.mxu0 0
  %516 = vmatprep.subr.bf16.mxu0 0
  %517 = vmatpush1.bf16.msra.mxu0 0
  %518 = vmatprep.subr.bf16.mxu0 0
  %519 = vmatpush1.bf16.msra.mxu0 0
  %520 = vmatprep.subr.bf16.mxu0 0
  %521 = vmatpush1.bf16.msra.mxu0 0
  %522 = vmatprep.subr.bf16.mxu0 0
  %523 = vmatpush1.bf16.msra.mxu0 0
  %524 = vmatprep.subr.bf16.mxu0 0
  %525 = vmatpush1.bf16.msra.mxu0 0
  %526 = vmatprep.subr.bf16.mxu0 0
  %527 = vmatpush1.bf16.msra.mxu0 0
  %528 = vmatprep.subr.bf16.mxu0 0
  %529 = vmatpush1.bf16.msra.mxu0 0
  %530 = vmatprep.subr.bf16.mxu0 0
  %531 = vmatpush1.bf16.msra.mxu0 0
  %532 = vmatprep.mubr.bf16.mxu0 0
  %533 = vmatmul.mubr.bf16.gmra.mrb[0].mxu0 %v477
  %v534 = vpop.f32.mrb[0].mxu0
  %v535 = vadd.f32 %v450, %v534
  %v536 = vpop.f32.mrb[0].mxu0
  %v537 = vpop.f32.mrb[0].mxu0
  %v538 = vadd.f32 %v450, %v537
  %v539 = vpop.f32.mrb[0].mxu0
  %540 = vmatprep.mubr.bf16.mxu0 0
  %541 = vmatmul.mubr.bf16.gmra.mrb[0].mxu0 %v480
  %v542 = vpop.f32.mrb[0].mxu0
  %v543 = vadd.f32 %v450, %v542
  %v544 = vpop.f32.mrb[0].mxu0
  %v545 = vpop.f32.mrb[0].mxu0
  %v546 = vadd.f32 %v450, %v545
  %v547 = vpop.f32.mrb[0].mxu0
  %548 = vmatprep.mubr.bf16.mxu0 0
  %549 = vmatmul.mubr.bf16.gmra.mrb[0].mxu0 %v483
  %v550 = vpop.f32.mrb[0].mxu0
  %v551 = vadd.f32 %v450, %v550
  %v552 = vpop.f32.mrb[0].mxu0
  %v553 = vpop.f32.mrb[0].mxu0
  %v554 = vadd.f32 %v450, %v553
  %v555 = vpop.f32.mrb[0].mxu0
  %556 = vmatprep.mubr.bf16.mxu0 0
  %557 = vmatmul.mubr.bf16.gmra.mrb[0].mxu0 %v486
  %v558 = vpop.f32.mrb[0].mxu0
  %v559 = vadd.f32 %v450, %v558
  %v560 = vpop.f32.mrb[0].mxu0
  %v561 = vpop.f32.mrb[0].mxu0
  %v562 = vadd.f32 %v450, %v561
  %v563 = vpop.f32.mrb[0].mxu0
  %564 = vmatprep.mubr.bf16.mxu0 0
  %565 = vmatmul.mubr.bf16.gmra.mrb[0].mxu0 %v489
  %v566 = vpop.f32.mrb[0].mxu0
  %v567 = vadd.f32 %v450, %v566
  %v568 = vpop.f32.mrb[0].mxu0
  %v569 = vpop.f32.mrb[0].mxu0
  %v570 = vadd.f32 %v450, %v569
  %v571 = vpop.f32.mrb[0].mxu0
  %572 = vmatprep.mubr.bf16.mxu0 0
  %573 = vmatmul.mubr.bf16.gmra.mrb[0].mxu0 %v492
  %v574 = vpop.f32.mrb[0].mxu0
  %v575 = vadd.f32 %v450, %v574
  %v576 = vpop.f32.mrb[0].mxu0
  %v577 = vpop.f32.mrb[0].mxu0
  %v578 = vadd.f32 %v450, %v577
  %v579 = vpop.f32.mrb[0].mxu0
  %580 = vmatprep.mubr.bf16.mxu0 0
  %581 = vmatmul.mubr.bf16.gmra.mrb[0].mxu0 %v495
  %v582 = vpop.f32.mrb[0].mxu0
  %v583 = vadd.f32 %v450, %v582
  %v584 = vpop.f32.mrb[0].mxu0
  %v585 = vpop.f32.mrb[0].mxu0
  %v586 = vadd.f32 %v450, %v585
  %v587 = vpop.f32.mrb[0].mxu0
  %588 = vmatprep.mubr.bf16.mxu0 0
  %589 = vmatmul.mubr.bf16.gmra.mrb[0].mxu0 %v498
  %v590 = vpop.f32.mrb[0].mxu0
  %v591 = vadd.f32 %v450, %v590
  %v592 = vpop.f32.mrb[0].mxu0
  %v593 = vpop.f32.mrb[0].mxu0
  %v594 = vadd.f32 %v450, %v593
  %v595 = vpop.f32.mrb[0].mxu0
  %596 = vdwg.mxu0
  %597 = vst [vmem:[%s7] sm:$0xff] %v535
  %598 = vst [vmem:[%s7 + $0x8] sm:$0xff] %v538
  %599 = vst [vmem:[%s7 + $0x10] sm:$0xff] %v543
  %600 = vst [vmem:[%s7 + $0x18] sm:$0xff] %v546
  %601 = vst [vmem:[%s7 + $0x20] sm:$0xff] %v551
  %602 = vst [vmem:[%s7 + $0x28] sm:$0xff] %v554
  %603 = vst [vmem:[%s7 + $0x30] sm:$0xff] %v559
  %604 = vst [vmem:[%s7 + $0x38] sm:$0xff] %v562
  %605 = vst [vmem:[%s7 + $0x40] sm:$0xff] %v567
  %606 = vst [vmem:[%s7 + $0x48] sm:$0xff] %v570
  %607 = vst [vmem:[%s7 + $0x50] sm:$0xff] %v575
  %608 = vst [vmem:[%s7 + $0x58] sm:$0xff] %v578
  %609 = vst [vmem:[%s7 + $0x60] sm:$0xff] %v583
  %610 = vst [vmem:[%s7 + $0x68] sm:$0xff] %v586
  %611 = vst [vmem:[%s7 + $0x70] sm:$0xff] %v591
  %612 = vst [vmem:[%s7 + $0x78] sm:$0xff] %v594
  // Predicated region
  $region30: #{_pallas_forward.1} parent=0 // pred_check
    _
  $region31: #{_pallas_forward.1} parent=0 // pred_check_branch
    %614 = sbr.rel (0) target = $region33
  $region32: #{_pallas_forward.1} parent=0 // pred_region
    _
  $region33: #{_pallas_forward.1} parent=0 // pred_fallthru
    _
  // Predicated region
  $region34: #{_pallas_forward.1} parent=0 // pred_check
    _
  $region35: #{_pallas_forward.1} parent=0 // pred_check_branch
    %616 = sbr.rel (0) target = $region37
  $region36: #{_pallas_forward.1} parent=0 // pred_region
    _
  $region37: #{_pallas_forward.1} parent=0 // pred_fallthru
    _

</llo_original>
